<compile_context>
chip_gen: v7x
topology: tpu7x:2x2x1
jax: 0.10.0
libtpu: 0.0.40
codegen_flags: <defaults>
</compile_context>

<pallas_src>
import functools

import jax
import jax.numpy as jnp
from jax.experimental import pallas as pl
from jax.experimental.pallas import tpu as pltpu


def _round_up(n, m):
    return ((n + m - 1) // m) * m


def _fold_factor(dim):
    """How many samples are folded into one 128-lane row."""
    if dim <= 128 and 128 % dim == 0:
        return 128 // dim
    return 1  # dim already lane-sized (or awkward): no fold, still correct.


def pack_resblock_params(w1, b1, w2, b2):
    """Pack ResBlock params ONCE (hoist this out of the per-call forward path).

    w1: (dim, n_units)  (= PyTorch Linear(dim, n_units).weight.T)
    b1: (n_units,)
    w2: (n_units, dim)  (= PyTorch Linear(n_units, dim).weight.T)
    b2: (dim,)

    Returns (p1, p2, meta):
      p1 rows [0:k1] = block-diagonal W1, row k1 = tiled b1
      p2 rows [0:k2] = block-diagonal W2, row k2 = tiled b2
      meta = static layout integers.
    The zero padding of the hidden width and the block-diagonal zeros are
    numerically inert (tanh(0 + 0) = 0 rows hit zero rows of W2).
    """
    dim, n_units = w1.shape
    fold = _fold_factor(dim)
    # Hidden padded so fold * n_pad is a multiple of 128 (lane-dense hidden)
    # and n_pad is a multiple of 8.
    n_pad = _round_up(n_units, max(8, 128 // fold))
    k1 = fold * dim      # folded input/output width (128 when dim | 128)
    k2 = fold * n_pad    # folded hidden width

    dt = w1.dtype
    eye = jnp.eye(fold, dtype=dt)

    w1p = jnp.zeros((dim, n_pad), dt).at[:, :n_units].set(w1)
    b1p = jnp.zeros((n_pad,), dt).at[:n_units].set(b1)
    w2p = jnp.zeros((n_pad, dim), dt).at[:n_units, :].set(w2)

    w1_bd = jnp.kron(eye, w1p)            # (k1, k2) block-diagonal
    w2_bd = jnp.kron(eye, w2p)            # (k2, k1) block-diagonal
    b1r = jnp.tile(b1p, fold)             # (k2,)
    b2r = jnp.tile(b2.astype(dt), fold)   # (k1,)

    # Bias packed as one extra row of each weight buffer -> 2 DMA buffers.
    p1 = jnp.zeros((_round_up(k1 + 1, 8), k2), dt)
    p1 = p1.at[:k1, :].set(w1_bd).at[k1, :].set(b1r)
    p2 = jnp.zeros((_round_up(k2 + 1, 8), k1), dt)
    p2 = p2.at[:k2, :].set(w2_bd).at[k2, :].set(b2r)

    meta = dict(dim=dim, fold=fold, k1=k1, k2=k2)
    return p1, p2, meta


def _resblock_kernel(x_ref, p1_ref, p2_ref, o_ref, *, k1, k2):
    # x_ref:  (tmf, k1)   folded batch tile (fold samples per 128-lane row)
    # p1_ref: rows [0:k1] = W1 block-diag, row k1 = tiled b1
    # p2_ref: rows [0:k2] = W2 block-diag, row k2 = tiled b2
    x = x_ref[...].astype(jnp.float32)
    w1 = p1_ref[0:k1, :]
    b1 = p1_ref[k1:k1 + 1, :]
    w2 = p2_ref[0:k2, :]
    b2 = p2_ref[k2:k2 + 1, :]

    h = jnp.tanh(jnp.dot(x, w1, preferred_element_type=jnp.float32) + b1)
    y = jnp.dot(h, w2, preferred_element_type=jnp.float32) + b2
    o_ref[...] = (y + x).astype(o_ref.dtype)


def resblock_forward(x, p1, p2, meta, *, tm=8192):
    """Fused ResBlock forward: tanh(x @ W1 + b1) @ W2 + b2 + x.

    x: (B, dim); p1/p2/meta come from pack_resblock_params (packing hoisted).
    tm: batch tile in samples.
    """
    B, dim = x.shape
    fold, k1, k2 = meta["fold"], meta["k1"], meta["k2"]
    assert meta["dim"] == dim

    # Fold `fold` samples per 128-lane row (free, contiguous reshape). Only a
    # tiny (< fold rows) pad when B is not a fold multiple; no padding to a
    # tile multiple — the last grid block runs ragged and OOB rows are
    # discarded (row-independent math).
    b8 = _round_up(B, fold)
    xp = x if b8 == B else jnp.pad(x, ((0, b8 - B), (0, 0)))
    bf = b8 // fold
    xr = xp.reshape(bf, k1)

    # Folded-row tile: big enough to amortize per-step overhead, capped so the
    # "parallel" axis keeps >=2 steps when the batch allows (v7x has 2 TCs).
    if bf <= 8:
        tmf = bf                      # one block covering the (tiny) batch
    else:
        tmf = max(8, _round_up(tm, 8 * fold) // fold)
        tmf = min(tmf, max(8, _round_up(pl.cdiv(bf, 2), 8)))
    grid = (pl.cdiv(bf, tmf),)

    kernel = functools.partial(_resblock_kernel, k1=k1, k2=k2)

    out = pl.pallas_call(
        kernel,
        out_shape=jax.ShapeDtypeStruct((bf, k1), x.dtype),
        grid=grid,
        in_specs=[
            pl.BlockSpec((tmf, k1), lambda i: (i, 0)),
            # Constant index_map: params fetched once, VMEM-resident.
            pl.BlockSpec(p1.shape, lambda i: (0, 0)),
            pl.BlockSpec(p2.shape, lambda i: (0, 0)),
        ],
        out_specs=pl.BlockSpec((tmf, k1), lambda i: (i, 0)),
        compiler_params=pltpu.CompilerParams(
            # Batch tiles are independent -> v7x can split steps across 2 TCs.
            dimension_semantics=("parallel",),
        ),
    )(xr, p1, p2)

    out = out.reshape(b8, dim)
    return out if b8 == B else out[:B]


def resblock_reference(x, w1, b1, w2, b2):
    return jnp.tanh(x @ w1 + b1) @ w2 + b2 + x


if __name__ == "__main__":
    dim, n_units = 16, 50
    key = jax.random.PRNGKey(0)
    k_x, k_w1, k_b1, k_w2, k_b2, k_x2 = jax.random.split(key, 6)

    # --- Test 1: random parameters (validates both matmuls, bias broadcast,
    #     tanh, residual, the 8-sample fold, a multi-step "parallel" grid and
    #     a ragged last block).
    batch = 80                      # bf = 10 folded rows -> 2 grid steps
    x = jax.random.normal(k_x, (batch, dim), dtype=jnp.float32)
    w1 = jax.random.normal(k_w1, (dim, n_units), dtype=jnp.float32) * 0.3
    b1 = jax.random.normal(k_b1, (n_units,), dtype=jnp.float32) * 0.1
    w2 = jax.random.normal(k_w2, (n_units, dim), dtype=jnp.float32) * 0.3
    b2 = jax.random.normal(k_b2, (dim,), dtype=jnp.float32) * 0.1

    p1, p2, meta = pack_resblock_params(w1, b1, w2, b2)   # hoisted packing
    out = jax.block_until_ready(resblock_forward(x, p1, p2, meta, tm=64))
    ref = resblock_reference(x, w1, b1, w2, b2)
    assert out.shape == (batch, dim)
    assert jnp.allclose(out, ref, atol=1e-5, rtol=1e-5)

    # --- Test 2: the module's actual init (init_network_weights_zero), where
    #     the forward must reduce to the identity.  Also exercises the
    #     default (large) tile and the bf < 8 path.
    batch2 = 8
    x2 = jax.random.normal(k_x2, (batch2, dim), dtype=jnp.float32)
    w1z = jnp.zeros((dim, n_units), jnp.float32)
    b1z = jnp.zeros((n_units,), jnp.float32)
    w2z = jnp.zeros((n_units, dim), jnp.float32)
    b2z = jnp.zeros((dim,), jnp.float32)
    p1z, p2z, metaz = pack_resblock_params(w1z, b1z, w2z, b2z)
    out2 = jax.block_until_ready(resblock_forward(x2, p1z, p2z, metaz))
    assert jnp.allclose(out2, x2, atol=1e-6, rtol=1e-6)

    print("KERNEL_OK")
</pallas_src>

<mosaic_0001>
module attributes {stable_mosaic.version = 11 : i64} {
  func.func @_resblock_kernel(%arg0: i32, %arg1: memref<8x128xf32, #tpu.memory_space<vmem>>, %arg2: memref<136x512xf32, #tpu.memory_space<vmem>>, %arg3: memref<520x128xf32, #tpu.memory_space<vmem>>, %arg4: memref<8x128xf32, #tpu.memory_space<vmem>>) attributes {dimension_semantics = [#tpu.dimension_semantics<parallel>], iteration_bounds = array<i64: 2>, scalar_prefetch = 0 : i64, scratch_operands = 0 : i64, tpu.core_type = #tpu.core_type<tc>, window_params = [{transform_indices = @transform_0, window_bounds = array<i64: 8, 128>}, {pipeline_mode = #tpu.pipeline_mode<synchronous>, transform_indices = @transform_1, window_bounds = array<i64: 136, 512>}, {pipeline_mode = #tpu.pipeline_mode<synchronous>, transform_indices = @transform_2, window_bounds = array<i64: 520, 128>}, {transform_indices = @transform_3, window_bounds = array<i64: 8, 128>}]} {
    %c0 = arith.constant 0 : index
    %c0_0 = arith.constant 0 : index
    %0 = vector.load %arg1[%c0, %c0_0] : memref<8x128xf32, #tpu.memory_space<vmem>>, vector<8x128xf32>
    %c0_1 = arith.constant 0 : index
    %c0_2 = arith.constant 0 : index
    %1 = vector.load %arg2[%c0_1, %c0_2] : memref<136x512xf32, #tpu.memory_space<vmem>>, vector<128x512xf32>
    %c128 = arith.constant 128 : index
    %c0_3 = arith.constant 0 : index
    %2 = vector.load %arg2[%c128, %c0_3] : memref<136x512xf32, #tpu.memory_space<vmem>>, vector<1x512xf32>
    %c0_4 = arith.constant 0 : index
    %c0_5 = arith.constant 0 : index
    %3 = vector.load %arg3[%c0_4, %c0_5] : memref<520x128xf32, #tpu.memory_space<vmem>>, vector<512x128xf32>
    %c512 = arith.constant 512 : index
    %c0_6 = arith.constant 0 : index
    %4 = vector.load %arg3[%c512, %c0_6] : memref<520x128xf32, #tpu.memory_space<vmem>>, vector<1x128xf32>
    %cst = arith.constant dense<0.000000e+00> : vector<8x512xf32>
    %5 = tpu.matmul %0, %1, %cst {dimension_numbers = #tpu.dot_dimension_numbers<[1], [0], [0], [1], [0, 0, 1, 1], [], []>} : vector<8x128xf32>, vector<128x512xf32>, vector<8x512xf32> -> vector<8x512xf32>
    %6 = vector.broadcast %2 : vector<1x512xf32> to vector<8x512xf32>
    %7 = arith.addf %5, %6 : vector<8x512xf32>
    %8 = math.tanh %7 : vector<8x512xf32>
    %cst_7 = arith.constant dense<0.000000e+00> : vector<8x128xf32>
    %9 = tpu.matmul %8, %3, %cst_7 {dimension_numbers = #tpu.dot_dimension_numbers<[1], [0], [0], [1], [0, 0, 1, 1], [], []>} : vector<8x512xf32>, vector<512x128xf32>, vector<8x128xf32> -> vector<8x128xf32>
    %10 = vector.broadcast %4 : vector<1x128xf32> to vector<8x128xf32>
    %11 = arith.addf %9, %10 : vector<8x128xf32>
    %12 = arith.addf %11, %0 : vector<8x128xf32>
    %c0_8 = arith.constant 0 : index
    %c0_9 = arith.constant 0 : index
    %13 = vector.load %arg4[%c0_8, %c0_9] : memref<8x128xf32, #tpu.memory_space<vmem>>, vector<8x128xf32>
    tpu.vector_store %arg4[%c0_8, %c0_9], %12 {strides = array<i32>} : memref<8x128xf32, #tpu.memory_space<vmem>>, vector<8x128xf32>,
    return
  }
  func.func @transform_0(%arg0: i32) -> (i32, i32) {
    %c0_i32 = arith.constant 0 : i32
    %c0_i32_0 = arith.constant 0 : i32
    return %arg0, %c0_i32 : i32, i32
  }
  func.func @transform_1(%arg0: i32) -> (i32, i32) {
    %c0_i32 = arith.constant 0 : i32
    %c0_i32_0 = arith.constant 0 : i32
    %c0_i32_1 = arith.constant 0 : i32
    return %c0_i32, %c0_i32_0 : i32, i32
  }
  func.func @transform_2(%arg0: i32) -> (i32, i32) {
    %c0_i32 = arith.constant 0 : i32
    %c0_i32_0 = arith.constant 0 : i32
    %c0_i32_1 = arith.constant 0 : i32
    return %c0_i32, %c0_i32_0 : i32, i32
  }
  func.func @transform_3(%arg0: i32) -> (i32, i32) {
    %c0_i32 = arith.constant 0 : i32
    %c0_i32_0 = arith.constant 0 : i32
    return %arg0, %c0_i32 : i32, i32
  }
}

</mosaic_0001>

<llo_original>
// kernel: tpu_custom_call.1
$region0: #{tpu_custom_call.1}
  #allocation0 [shape = 'u32[]', space=smem, size = 0x4, offset = 0x4, fixed_abs, tag = 'smem constant byte address 0x4 - core index']
  #allocation1 [shape = 'u32[144,128]{1,0:T(1,128)}', space=vmem, size = 0x12000, scoped, tag = 'internal scratch']
  %s0 = inlined_call_operand.hbm [shape: f32[10,128], index: 0, kind: input, shape index: {}]
  %s1 = inlined_call_operand.hbm [shape: f32[136,512], index: 1, kind: input, shape index: {}]
  %s2 = inlined_call_operand.hbm [shape: f32[520,128], index: 2, kind: input, shape index: {}]
  %s3 = inlined_call_operand.hbm [shape: f32[10,128], index: 3, kind: output, shape index: {}]
  %s4 = sld [smem:[#allocation0]]
  $region57: #{tpu_custom_call.1} parent=0
    _
  %s6 = ssub.s32 1, %s4
  %s7 = scalar_select 0, %s6, %s4
  $region1: #{tpu_custom_call.1} parent=0
    #allocation2 [shape = 'u8[8192]{0}', space=vmem, size = 0x2000, scoped, tag = 'input window, operand 0']
    #allocation3 [shape = 's32[2]{0}', space=sflag, size = 0x8, scoped, tag = 'scoped memory for tpu_custom_call.1']
    #allocation4 [shape = 's32[2]{0}', space=sflag, size = 0x8, scoped, tag = 'scoped memory for tpu_custom_call.1']
    #allocation5 [shape = 'u8[278528]{0}', space=vmem, size = 0x44000, scoped, tag = 'input window, operand 1, single buffered']
    #allocation6 [shape = 's32[1]{0}', space=sflag, size = 0x4, scoped, tag = 'scoped memory for tpu_custom_call.1']
    #allocation7 [shape = 'u8[266240]{0}', space=vmem, size = 0x41000, scoped, tag = 'input window, operand 2, single buffered']
    #allocation8 [shape = 'u8[8192]{0}', space=vmem, size = 0x2000, scoped, tag = 'output window, operand 0']
    %8 = vsyncpa [#allocation3], 0
    %s9 = scalar_lea.sflag [#allocation3], 1
    %10 = vsyncpa %s9, 0
    %11 = vsyncpa [#allocation6], 0
    %12 = vsyncpa [#allocation4], 0
    %s13 = scalar_lea.sflag [#allocation4], 1
    %14 = vsyncpa %s13, 0
    loop: start=0, step=1, limit=4
    $region2: #{tpu_custom_call.1} parent=1 // loop_pre_header
      _
    $region3: #{tpu_custom_call.1} parent=1 // loop_header
      %s16 = sphi 0, %s20
      %p17 = scmp.ge.s32.totalorder %s16, 4
      %s26 = sphi 0, %s28
      %s29 = sphi 0, %s26
      %s30 = sphi 0, %s29
      %s46 = sphi 0, %s30
      %s50 = sphi 0, %s50
      %s52 = sphi 0, %s50
      %s53 = sphi 0, %s52
      %s67 = sphi 0, %s53
      %s71 = sphi 0, %s71
      %s73 = sphi 0, %s71
      %s74 = sphi 0, %s73
      %s88 = sphi 0, %s74
      %s94 = sphi 0, %s96
      %s97 = sphi 0, %s94
      %s98 = sphi 0, %s97
      %s114 = sphi 0, %s98
    $region4: #{tpu_custom_call.1} parent=1 // loop_header_branch
      %19 = sbr.rel (%p17) target = $region8
    $region5: #{tpu_custom_call.1} parent=1 // loop_body
      %s21 = ssub.s32 %s16, 1
      %s22 = ssub.s32 %s16, 2
      %s23 = sadd.s32 %s16, 1
      %s24 = ssub.s32 %s16, %s23
      %p25 = scmp.eq.s32.totalorder %s24, 0
      %s27 = sadd.s32 %s26, 1
      %s28 = scalar_select %p25, %s26, %s27
      %p31 = pneg %p25
      %p32 = scmp.eq.s32.totalorder %s16, 1
      %p33 = por %p31, %p32
      %p34 = scmp.ne.s32.totalorder %s26, %s29
      %p35 = scmp.eq.s32.totalorder %s16, 0
      %p36 = por %p34, %p35
      %p37 = scmp.ne.s32.totalorder %s26, %s29
      %p38 = scmp.eq.s32.totalorder %s21, 1
      %p39 = por %p37, %p38
      %p40 = scmp.ne.s32.totalorder %s29, %s30
      %p41 = scmp.eq.s32.totalorder %s21, 0
      %p42 = por %p40, %p41
      %p43 = scmp.ne.s32.totalorder %s29, %s30
      %p44 = scmp.eq.s32.totalorder %s22, 1
      %p45 = por %p43, %p44
      %p47 = scmp.ne.s32.totalorder %s30, %s46
      %p48 = scmp.eq.s32.totalorder %s22, 0
      %p49 = por %p47, %p48
      %s51 = sadd.s32 %s50, 1
      %p54 = scmp.eq.s32.totalorder %s16, 1
      %p55 = scmp.ne.s32.totalorder %s50, %s52
      %p56 = scmp.eq.s32.totalorder %s16, 0
      %p57 = por %p55, %p56
      %p58 = scmp.ne.s32.totalorder %s50, %s52
      %p59 = scmp.eq.s32.totalorder %s21, 1
      %p60 = por %p58, %p59
      %p61 = scmp.ne.s32.totalorder %s52, %s53
      %p62 = scmp.eq.s32.totalorder %s21, 0
      %p63 = por %p61, %p62
      %p64 = scmp.ne.s32.totalorder %s52, %s53
      %p65 = scmp.eq.s32.totalorder %s22, 1
      %p66 = por %p64, %p65
      %p68 = scmp.ne.s32.totalorder %s53, %s67
      %p69 = scmp.eq.s32.totalorder %s22, 0
      %p70 = por %p68, %p69
      %s72 = sadd.s32 %s71, 1
      %p75 = scmp.eq.s32.totalorder %s16, 1
      %p76 = scmp.ne.s32.totalorder %s71, %s73
      %p77 = scmp.eq.s32.totalorder %s16, 0
      %p78 = por %p76, %p77
      %p79 = scmp.ne.s32.totalorder %s71, %s73
      %p80 = scmp.eq.s32.totalorder %s21, 1
      %p81 = por %p79, %p80
      %p82 = scmp.ne.s32.totalorder %s73, %s74
      %p83 = scmp.eq.s32.totalorder %s21, 0
      %p84 = por %p82, %p83
      %p85 = scmp.ne.s32.totalorder %s73, %s74
      %p86 = scmp.eq.s32.totalorder %s22, 1
      %p87 = por %p85, %p86
      %p89 = scmp.ne.s32.totalorder %s74, %s88
      %p90 = scmp.eq.s32.totalorder %s22, 0
      %p91 = por %p89, %p90
      %s92 = ssub.s32 %s16, %s23
      %p93 = scmp.eq.s32.totalorder %s92, 0
      %s95 = sadd.s32 %s94, 1
      %s96 = scalar_select %p93, %s94, %s95
      %p99 = pneg %p93
      %p100 = scmp.eq.s32.totalorder %s16, 1
      %p101 = por %p99, %p100
      %p102 = scmp.ne.s32.totalorder %s94, %s97
      %p103 = scmp.eq.s32.totalorder %s16, 0
      %p104 = por %p102, %p103
      %p105 = scmp.ne.s32.totalorder %s94, %s97
      %p106 = scmp.eq.s32.totalorder %s21, 1
      %p107 = por %p105, %p106
      %p108 = scmp.ne.s32.totalorder %s97, %s98
      %p109 = scmp.eq.s32.totalorder %s21, 0
      %p110 = por %p108, %p109
      %p111 = scmp.ne.s32.totalorder %s97, %s98
      %p112 = scmp.eq.s32.totalorder %s22, 1
      %p113 = por %p111, %p112
      %p115 = scmp.ne.s32.totalorder %s98, %s114
      %p116 = scmp.eq.s32.totalorder %s22, 0
      %p117 = por %p115, %p116
      %p118 = scmp.le.s32.totalorder 1, %s16
      %p119 = scmp.lt.s32.totalorder %s16, 3
      %p120 = pnand %p118, %p119
      %p121 = pneg %p120
      // Predicated region
      $region9: #{tpu_custom_call.1} parent=5 // pred_check
        _
      $region10: #{tpu_custom_call.1} parent=5 // pred_check_branch
        %123 = sbr.rel (%p120) target = $region12
      $region11: #{tpu_custom_call.1} parent=5 // pred_region
        %s124 = ssub.s32 %s16, 1
        // Predicated region
        $region13: #{tpu_custom_call.1} parent=11 // pred_check
          %p125 = pneg %p63
        $region14: #{tpu_custom_call.1} parent=11 // pred_check_branch
          %127 = sbr.rel (%p125) target = $region16
        $region15: #{tpu_custom_call.1} parent=11 // pred_region
          %s129 = ssub.s32 8704, 8704
          %130 = vsyncadd [#allocation6], %s129
          %s131 = sshll.u32 [#allocation5], 4
          %s132 = int_to_ptr.vmem [resolvable:$true] %s131
          %137 = dma.hbm_to_vmem [thread:$0]  %s1, 8704, %s132, [#allocation6], 512, 512, 32
        $region16: #{tpu_custom_call.1} parent=11 // pred_fallthru
          _
        // Predicated region
        $region17: #{tpu_custom_call.1} parent=11 // pred_check
          %p138 = pneg %p84
        $region18: #{tpu_custom_call.1} parent=11 // pred_check_branch
          %140 = sbr.rel (%p138) target = $region20
        $region19: #{tpu_custom_call.1} parent=11 // pred_region
          %s142 = ssub.s32 8320, 8320
          %143 = vsyncadd [#allocation6], %s142
          %s144 = sshll.u32 [#allocation7], 4
          %s145 = int_to_ptr.vmem [resolvable:$true] %s144
          %150 = dma.hbm_to_vmem [thread:$0]  %s2, 8320, %s145, [#allocation6], 128, 128, 8
        $region20: #{tpu_custom_call.1} parent=11 // pred_fallthru
          _
      $region12: #{tpu_custom_call.1} parent=5 // pred_fallthru
        _
      %p151 = scmp.lt.s32.totalorder %s16, 2
      // Predicated region
      $region21: #{tpu_custom_call.1} parent=5 // pred_check
        %p152 = pneg %p151
      $region22: #{tpu_custom_call.1} parent=5 // pred_check_branch
        %154 = sbr.rel (%p152) target = $region24
      $region23: #{tpu_custom_call.1} parent=5 // pred_region
        // Predicated region
        $region25: #{tpu_custom_call.1} parent=23 // pred_check
          %p155 = pneg %p36
        $region26: #{tpu_custom_call.1} parent=23 // pred_check_branch
          %157 = sbr.rel (%p155) target = $region28
        $region27: #{tpu_custom_call.1} parent=23 // pred_region
          %s158 = sand.u32 %s26, 1
          %s159 = scalar_lea.sflag [#allocation3], %s158
          %s160 = sand.u32 %s26, 1
          %s161 = smul.addr %s160, 8
          %s162 = scalar_lea.vmem [#allocation2], %s161
          %s164 = ssub.s32 128, 128
          %165 = vsyncadd %s159, %s164
          %s166 = smul.addr %s16, 128
          %s167 = scalar_lea.hbm %s0, %s166
          %s169 = sshll.u32 %s162, 4
          %s170 = int_to_ptr.vmem [resolvable:$true] %s169
          %172 = dma.hbm_to_vmem [thread:$0]  %s167, 128, %s170, %s159
        $region28: #{tpu_custom_call.1} parent=23 // pred_fallthru
          _
      $region24: #{tpu_custom_call.1} parent=5 // pred_fallthru
        _
      %p173 = scmp.le.s32.totalorder 1, %s16
      %p174 = scmp.lt.s32.totalorder %s16, 3
      %p175 = pnand %p173, %p174
      %p176 = pneg %p175
      // Predicated region
      $region29: #{tpu_custom_call.1} parent=5 // pred_check
        _
      $region30: #{tpu_custom_call.1} parent=5 // pred_check_branch
        %178 = sbr.rel (%p175) target = $region32
      $region31: #{tpu_custom_call.1} parent=5 // pred_region
        %s179 = ssub.s32 %s16, 1
        %s180 = sand.u32 %s29, 1
        %s181 = scalar_lea.sflag [#allocation3], %s180
        %s182 = sand.u32 %s29, 1
        %s183 = smul.addr %s182, 8
        %s184 = scalar_lea.vmem [#allocation2], %s183
        // Predicated region
        $region33: #{tpu_custom_call.1} parent=31 // pred_check
          %p185 = pneg %p42
        $region34: #{tpu_custom_call.1} parent=31 // pred_check_branch
          %187 = sbr.rel (%p185) target = $region36
        $region35: #{tpu_custom_call.1} parent=31 // pred_region
          %188 = dma.done %s181, 128
        $region36: #{tpu_custom_call.1} parent=31 // pred_fallthru
          _
        // Predicated region
        $region37: #{tpu_custom_call.1} parent=31 // pred_check
          %p189 = pneg %p63
        $region38: #{tpu_custom_call.1} parent=31 // pred_check_branch
          %191 = sbr.rel (%p189) target = $region40
        $region39: #{tpu_custom_call.1} parent=31 // pred_region
          %192 = dma.done [#allocation6], 8704
        $region40: #{tpu_custom_call.1} parent=31 // pred_fallthru
          _
        // Predicated region
        $region41: #{tpu_custom_call.1} parent=31 // pred_check
          %p193 = pneg %p84
        $region42: #{tpu_custom_call.1} parent=31 // pred_check_branch
          %195 = sbr.rel (%p193) target = $region44
        $region43: #{tpu_custom_call.1} parent=31 // pred_region
          %196 = dma.done [#allocation6], 8320
        $region44: #{tpu_custom_call.1} parent=31 // pred_fallthru
          _
        %s197 = sand.u32 %s29, 1
        %s198 = scalar_lea.sflag [#allocation3], %s197
        %s199 = sand.u32 %s29, 1
        %s200 = smul.addr %s199, 8
        %s201 = scalar_lea.vmem [#allocation2], %s200
        %p202 = pneg %p42
        %p203 = pneg %p39
        %p204 = pneg %p63
        %p205 = pneg %p60
        %p206 = pneg %p84
        %p207 = pneg %p81
        %p208 = pneg %p110
        %p209 = pneg %p107
        %s210 = sand.u32 %s97, 1
        %s211 = scalar_lea.sflag [#allocation4], %s210
        %s212 = sand.u32 %s97, 1
        %s213 = smul.addr %s212, 8
        %s214 = scalar_lea.vmem [#allocation8], %s213
        %v215 = vld [vmem:[%s184] sm:$0xff]
        %v216 = vld [vmem:[#allocation5] sm:$0xff]
        %v217 = vld [vmem:[#allocation5 + $0x8] sm:$0xff]
        %v218 = vld [vmem:[#allocation5 + $0x10] sm:$0xff]
        %v219 = vld [vmem:[#allocation5 + $0x18] sm:$0xff]
        %v220 = vld [vmem:[#allocation5 + $0x20] sm:$0xff]
        %v221 = vld [vmem:[#allocation5 + $0x28] sm:$0xff]
        %v222 = vld [vmem:[#allocation5 + $0x30] sm:$0xff]
        %v223 = vld [vmem:[#allocation5 + $0x38] sm:$0xff]
        %v224 = vld [vmem:[#allocation5 + $0x40] sm:$0xff]
        %v225 = vld [vmem:[#allocation5 + $0x48] sm:$0xff]
        %v226 = vld [vmem:[#allocation5 + $0x50] sm:$0xff]
        %v227 = vld [vmem:[#allocation5 + $0x58] sm:$0xff]
        %v228 = vld [vmem:[#allocation5 + $0x60] sm:$0xff]
        %v229 = vld [vmem:[#allocation5 + $0x68] sm:$0xff]
        %v230 = vld [vmem:[#allocation5 + $0x70] sm:$0xff]
        %v231 = vld [vmem:[#allocation5 + $0x78] sm:$0xff]
        %v232 = vld [vmem:[#allocation5 + $0x80] sm:$0xff]
        %v233 = vld [vmem:[#allocation5 + $0x88] sm:$0xff]
        %v234 = vld [vmem:[#allocation5 + $0x90] sm:$0xff]
        %v235 = vld [vmem:[#allocation5 + $0x98] sm:$0xff]
        %v236 = vld [vmem:[#allocation5 + $0xa0] sm:$0xff]
        %v237 = vld [vmem:[#allocation5 + $0xa8] sm:$0xff]
        %v238 = vld [vmem:[#allocation5 + $0xb0] sm:$0xff]
        %v239 = vld [vmem:[#allocation5 + $0xb8] sm:$0xff]
        %v240 = vld [vmem:[#allocation5 + $0xc0] sm:$0xff]
        %v241 = vld [vmem:[#allocation5 + $0xc8] sm:$0xff]
        %v242 = vld [vmem:[#allocation5 + $0xd0] sm:$0xff]
        %v243 = vld [vmem:[#allocation5 + $0xd8] sm:$0xff]
        %v244 = vld [vmem:[#allocation5 + $0xe0] sm:$0xff]
        %v245 = vld [vmem:[#allocation5 + $0xe8] sm:$0xff]
        %v246 = vld [vmem:[#allocation5 + $0xf0] sm:$0xff]
        %v247 = vld [vmem:[#allocation5 + $0xf8] sm:$0xff]
        %v248 = vld [vmem:[#allocation5 + $0x100] sm:$0xff]
        %v249 = vld [vmem:[#allocation5 + $0x108] sm:$0xff]
        %v250 = vld [vmem:[#allocation5 + $0x110] sm:$0xff]
        %v251 = vld [vmem:[#allocation5 + $0x118] sm:$0xff]
        %v252 = vld [vmem:[#allocation5 + $0x120] sm:$0xff]
        %v253 = vld [vmem:[#allocation5 + $0x128] sm:$0xff]
        %v254 = vld [vmem:[#allocation5 + $0x130] sm:$0xff]
        %v255 = vld [vmem:[#allocation5 + $0x138] sm:$0xff]
        %v256 = vld [vmem:[#allocation5 + $0x140] sm:$0xff]
        %v257 = vld [vmem:[#allocation5 + $0x148] sm:$0xff]
        %v258 = vld [vmem:[#allocation5 + $0x150] sm:$0xff]
        %v259 = vld [vmem:[#allocation5 + $0x158] sm:$0xff]
        %v260 = vld [vmem:[#allocation5 + $0x160] sm:$0xff]
        %v261 = vld [vmem:[#allocation5 + $0x168] sm:$0xff]
        %v262 = vld [vmem:[#allocation5 + $0x170] sm:$0xff]
        %v263 = vld [vmem:[#allocation5 + $0x178] sm:$0xff]
        %v264 = vld [vmem:[#allocation5 + $0x180] sm:$0xff]
        %v265 = vld [vmem:[#allocation5 + $0x188] sm:$0xff]
        %v266 = vld [vmem:[#allocation5 + $0x190] sm:$0xff]
        %v267 = vld [vmem:[#allocation5 + $0x198] sm:$0xff]
        %v268 = vld [vmem:[#allocation5 + $0x1a0] sm:$0xff]
        %v269 = vld [vmem:[#allocation5 + $0x1a8] sm:$0xff]
        %v270 = vld [vmem:[#allocation5 + $0x1b0] sm:$0xff]
        %v271 = vld [vmem:[#allocation5 + $0x1b8] sm:$0xff]
        %v272 = vld [vmem:[#allocation5 + $0x1c0] sm:$0xff]
        %v273 = vld [vmem:[#allocation5 + $0x1c8] sm:$0xff]
        %v274 = vld [vmem:[#allocation5 + $0x1d0] sm:$0xff]
        %v275 = vld [vmem:[#allocation5 + $0x1d8] sm:$0xff]
        %v276 = vld [vmem:[#allocation5 + $0x1e0] sm:$0xff]
        %v277 = vld [vmem:[#allocation5 + $0x1e8] sm:$0xff]
        %v278 = vld [vmem:[#allocation5 + $0x1f0] sm:$0xff]
        %v279 = vld [vmem:[#allocation5 + $0x1f8] sm:$0xff]
        %s280 = scalar_lea.vmem [#allocation5], 512
        %v281 = vld [vmem:[%s280] ss:$8 sm:$0xf]
        %v282 = vld [vmem:[#allocation7] sm:$0xff]
        %v283 = vld [vmem:[#allocation7 + $0x8] sm:$0xff]
        %v284 = vld [vmem:[#allocation7 + $0x10] sm:$0xff]
        %v285 = vld [vmem:[#allocation7 + $0x18] sm:$0xff]
        %v286 = vld [vmem:[#allocation7 + $0x20] sm:$0xff]
        %v287 = vld [vmem:[#allocation7 + $0x28] sm:$0xff]
        %v288 = vld [vmem:[#allocation7 + $0x30] sm:$0xff]
        %v289 = vld [vmem:[#allocation7 + $0x38] sm:$0xff]
        %v290 = vld [vmem:[#allocation7 + $0x40] sm:$0xff]
        %v291 = vld [vmem:[#allocation7 + $0x48] sm:$0xff]
        %v292 = vld [vmem:[#allocation7 + $0x50] sm:$0xff]
        %v293 = vld [vmem:[#allocation7 + $0x58] sm:$0xff]
        %v294 = vld [vmem:[#allocation7 + $0x60] sm:$0xff]
        %v295 = vld [vmem:[#allocation7 + $0x68] sm:$0xff]
        %v296 = vld [vmem:[#allocation7 + $0x70] sm:$0xff]
        %v297 = vld [vmem:[#allocation7 + $0x78] sm:$0xff]
        %v298 = vld [vmem:[#allocation7 + $0x80] sm:$0xff]
        %v299 = vld [vmem:[#allocation7 + $0x88] sm:$0xff]
        %v300 = vld [vmem:[#allocation7 + $0x90] sm:$0xff]
        %v301 = vld [vmem:[#allocation7 + $0x98] sm:$0xff]
        %v302 = vld [vmem:[#allocation7 + $0xa0] sm:$0xff]
        %v303 = vld [vmem:[#allocation7 + $0xa8] sm:$0xff]
        %v304 = vld [vmem:[#allocation7 + $0xb0] sm:$0xff]
        %v305 = vld [vmem:[#allocation7 + $0xb8] sm:$0xff]
        %v306 = vld [vmem:[#allocation7 + $0xc0] sm:$0xff]
        %v307 = vld [vmem:[#allocation7 + $0xc8] sm:$0xff]
        %v308 = vld [vmem:[#allocation7 + $0xd0] sm:$0xff]
        %v309 = vld [vmem:[#allocation7 + $0xd8] sm:$0xff]
        %v310 = vld [vmem:[#allocation7 + $0xe0] sm:$0xff]
        %v311 = vld [vmem:[#allocation7 + $0xe8] sm:$0xff]
        %v312 = vld [vmem:[#allocation7 + $0xf0] sm:$0xff]
        %v313 = vld [vmem:[#allocation7 + $0xf8] sm:$0xff]
        %v314 = vld [vmem:[#allocation7 + $0x100] sm:$0xff]
        %v315 = vld [vmem:[#allocation7 + $0x108] sm:$0xff]
        %v316 = vld [vmem:[#allocation7 + $0x110] sm:$0xff]
        %v317 = vld [vmem:[#allocation7 + $0x118] sm:$0xff]
        %v318 = vld [vmem:[#allocation7 + $0x120] sm:$0xff]
        %v319 = vld [vmem:[#allocation7 + $0x128] sm:$0xff]
        %v320 = vld [vmem:[#allocation7 + $0x130] sm:$0xff]
        %v321 = vld [vmem:[#allocation7 + $0x138] sm:$0xff]
        %v322 = vld [vmem:[#allocation7 + $0x140] sm:$0xff]
        %v323 = vld [vmem:[#allocation7 + $0x148] sm:$0xff]
        %v324 = vld [vmem:[#allocation7 + $0x150] sm:$0xff]
        %v325 = vld [vmem:[#allocation7 + $0x158] sm:$0xff]
        %v326 = vld [vmem:[#allocation7 + $0x160] sm:$0xff]
        %v327 = vld [vmem:[#allocation7 + $0x168] sm:$0xff]
        %v328 = vld [vmem:[#allocation7 + $0x170] sm:$0xff]
        %v329 = vld [vmem:[#allocation7 + $0x178] sm:$0xff]
        %v330 = vld [vmem:[#allocation7 + $0x180] sm:$0xff]
        %v331 = vld [vmem:[#allocation7 + $0x188] sm:$0xff]
        %v332 = vld [vmem:[#allocation7 + $0x190] sm:$0xff]
        %v333 = vld [vmem:[#allocation7 + $0x198] sm:$0xff]
        %v334 = vld [vmem:[#allocation7 + $0x1a0] sm:$0xff]
        %v335 = vld [vmem:[#allocation7 + $0x1a8] sm:$0xff]
        %v336 = vld [vmem:[#allocation7 + $0x1b0] sm:$0xff]
        %v337 = vld [vmem:[#allocation7 + $0x1b8] sm:$0xff]
        %v338 = vld [vmem:[#allocation7 + $0x1c0] sm:$0xff]
        %v339 = vld [vmem:[#allocation7 + $0x1c8] sm:$0xff]
        %v340 = vld [vmem:[#allocation7 + $0x1d0] sm:$0xff]
        %v341 = vld [vmem:[#allocation7 + $0x1d8] sm:$0xff]
        %v342 = vld [vmem:[#allocation7 + $0x1e0] sm:$0xff]
        %v343 = vld [vmem:[#allocation7 + $0x1e8] sm:$0xff]
        %v344 = vld [vmem:[#allocation7 + $0x1f0] sm:$0xff]
        %v345 = vld [vmem:[#allocation7 + $0x1f8] sm:$0xff]
        %v346 = vld [vmem:[#allocation7 + $0x200] sm:$0x1]
        %v348 = vlaneseq
        %v349 = vshrl.u32 %v348, 7
        %v350 = vsub.s32 0, %v349
        %v351 = vrot.slane %v281, %v350
        %v352 = vlaneseq
        %v353 = vshrl.u32 %v352, 7
        %v354 = vsub.s32 1, %v353
        %v355 = vrot.slane %v281, %v354
        %v356 = vlaneseq
        %v357 = vshrl.u32 %v356, 7
        %v358 = vsub.s32 2, %v357
        %v359 = vrot.slane %v281, %v358
        %v360 = vlaneseq
        %v361 = vshrl.u32 %v360, 7
        %v362 = vsub.s32 3, %v361
        %v363 = vrot.slane %v281, %v362
        %368 = vmatprep.subr.mxu0 %v217
        %369 = vmatpush1.msra.mxu0 %v216
        %370 = vmatprep.subr.mxu0 %v221
        %371 = vmatpush1.msra.mxu0 %v220
        %372 = vmatprep.subr.mxu0 %v225
        %373 = vmatpush1.msra.mxu0 %v224
        %374 = vmatprep.subr.mxu0 %v229
        %375 = vmatpush1.msra.mxu0 %v228
        %376 = vmatprep.subr.mxu0 %v233
        %377 = vmatpush1.msra.mxu0 %v232
        %378 = vmatprep.subr.mxu0 %v237
        %379 = vmatpush1.msra.mxu0 %v236
        %380 = vmatprep.subr.mxu0 %v241
        %381 = vmatpush1.msra.mxu0 %v240
        %382 = vmatprep.subr.mxu0 %v245
        %383 = vmatpush1.msra.mxu0 %v244
        %384 = vmatprep.subr.mxu0 %v249
        %385 = vmatpush1.msra.mxu0 %v248
        %386 = vmatprep.subr.mxu0 %v253
        %387 = vmatpush1.msra.mxu0 %v252
        %388 = vmatprep.subr.mxu0 %v257
        %389 = vmatpush1.msra.mxu0 %v256
        %390 = vmatprep.subr.mxu0 %v261
        %391 = vmatpush1.msra.mxu0 %v260
        %392 = vmatprep.subr.mxu0 %v265
        %393 = vmatpush1.msra.mxu0 %v264
        %394 = vmatprep.subr.mxu0 %v269
        %395 = vmatpush1.msra.mxu0 %v268
        %396 = vmatprep.subr.mxu0 %v273
        %397 = vmatpush1.msra.mxu0 %v272
        %398 = vmatprep.subr.mxu0 %v277
        %399 = vmatpush1.msra.mxu0 %v276
        %400 = vmatprep.subr.mxu0 0.0
        %401 = vmatpush1.msra.mxu0 0.0
        %402 = vmatprep.subr.mxu0 0.0
        %403 = vmatpush1.msra.mxu0 0.0
        %404 = vmatprep.subr.mxu0 0.0
        %405 = vmatpush1.msra.mxu0 0.0
        %406 = vmatprep.subr.mxu0 0.0
        %407 = vmatpush1.msra.mxu0 0.0
        %408 = vmatprep.subr.mxu0 0.0
        %409 = vmatpush1.msra.mxu0 0.0
        %410 = vmatprep.subr.mxu0 0.0
        %411 = vmatpush1.msra.mxu0 0.0
        %412 = vmatprep.subr.mxu0 0.0
        %413 = vmatpush1.msra.mxu0 0.0
        %414 = vmatprep.subr.mxu0 0.0
        %415 = vmatpush1.msra.mxu0 0.0
        %416 = vmatprep.subr.mxu0 0.0
        %417 = vmatpush1.msra.mxu0 0.0
        %418 = vmatprep.subr.mxu0 0.0
        %419 = vmatpush1.msra.mxu0 0.0
        %420 = vmatprep.subr.mxu0 0.0
        %421 = vmatpush1.msra.mxu0 0.0
        %422 = vmatprep.subr.mxu0 0.0
        %423 = vmatpush1.msra.mxu0 0.0
        %424 = vmatprep.subr.mxu0 0.0
        %425 = vmatpush1.msra.mxu0 0.0
        %426 = vmatprep.subr.mxu0 0.0
        %427 = vmatpush1.msra.mxu0 0.0
        %428 = vmatprep.subr.mxu0 0.0
        %429 = vmatpush1.msra.mxu0 0.0
        %430 = vmatprep.subr.mxu0 0.0
        %431 = vmatpush1.msra.mxu0 0.0
        %432 = vmatprep.mubr.f32.mxu0 0.0
        %433 = vmatmul.mubr.f32.gmra.mrb[0].mxu0 %v215
        %v434 = vpop.f32.mrb[0].mxu0
        %v435 = vadd.f32 %v351, %v434
        %v436 = vpop.f32.mrb[0].mxu0
        %v437 = vadd.f32 %v355, %v436
        %438 = vdwg.mxu0
        %439 = vmatprep.subr.mxu0 %v219
        %440 = vmatpush1.msra.mxu0 %v218
        %441 = vmatprep.subr.mxu0 %v223
        %442 = vmatpush1.msra.mxu0 %v222
        %443 = vmatprep.subr.mxu0 %v227
        %444 = vmatpush1.msra.mxu0 %v226
        %445 = vmatprep.subr.mxu0 %v231
        %446 = vmatpush1.msra.mxu0 %v230
        %447 = vmatprep.subr.mxu0 %v235
        %448 = vmatpush1.msra.mxu0 %v234
        %449 = vmatprep.subr.mxu0 %v239
        %450 = vmatpush1.msra.mxu0 %v238
        %451 = vmatprep.subr.mxu0 %v243
        %452 = vmatpush1.msra.mxu0 %v242
        %453 = vmatprep.subr.mxu0 %v247
        %454 = vmatpush1.msra.mxu0 %v246
        %455 = vmatprep.subr.mxu0 %v251
        %456 = vmatpush1.msra.mxu0 %v250
        %457 = vmatprep.subr.mxu0 %v255
        %458 = vmatpush1.msra.mxu0 %v254
        %459 = vmatprep.subr.mxu0 %v259
        %460 = vmatpush1.msra.mxu0 %v258
        %461 = vmatprep.subr.mxu0 %v263
        %462 = vmatpush1.msra.mxu0 %v262
        %463 = vmatprep.subr.mxu0 %v267
        %464 = vmatpush1.msra.mxu0 %v266
        %465 = vmatprep.subr.mxu0 %v271
        %466 = vmatpush1.msra.mxu0 %v270
        %467 = vmatprep.subr.mxu0 %v275
        %468 = vmatpush1.msra.mxu0 %v274
        %469 = vmatprep.subr.mxu0 %v279
        %470 = vmatpush1.msra.mxu0 %v278
        %471 = vmatprep.subr.mxu0 0.0
        %472 = vmatpush1.msra.mxu0 0.0
        %473 = vmatprep.subr.mxu0 0.0
        %474 = vmatpush1.msra.mxu0 0.0
        %475 = vmatprep.subr.mxu0 0.0
        %476 = vmatpush1.msra.mxu0 0.0
        %477 = vmatprep.subr.mxu0 0.0
        %478 = vmatpush1.msra.mxu0 0.0
        %479 = vmatprep.subr.mxu0 0.0
        %480 = vmatpush1.msra.mxu0 0.0
        %481 = vmatprep.subr.mxu0 0.0
        %482 = vmatpush1.msra.mxu0 0.0
        %483 = vmatprep.subr.mxu0 0.0
        %484 = vmatpush1.msra.mxu0 0.0
        %485 = vmatprep.subr.mxu0 0.0
        %486 = vmatpush1.msra.mxu0 0.0
        %487 = vmatprep.subr.mxu0 0.0
        %488 = vmatpush1.msra.mxu0 0.0
        %489 = vmatprep.subr.mxu0 0.0
        %490 = vmatpush1.msra.mxu0 0.0
        %491 = vmatprep.subr.mxu0 0.0
        %492 = vmatpush1.msra.mxu0 0.0
        %493 = vmatprep.subr.mxu0 0.0
        %494 = vmatpush1.msra.mxu0 0.0
        %495 = vmatprep.subr.mxu0 0.0
        %496 = vmatpush1.msra.mxu0 0.0
        %497 = vmatprep.subr.mxu0 0.0
        %498 = vmatpush1.msra.mxu0 0.0
        %499 = vmatprep.subr.mxu0 0.0
        %500 = vmatpush1.msra.mxu0 0.0
        %501 = vmatprep.subr.mxu0 0.0
        %502 = vmatpush1.msra.mxu0 0.0
        %503 = vmatprep.mubr.f32.mxu0 0.0
        %504 = vmatmul.mubr.f32.gmra.mrb[0].mxu0 %v215
        %v505 = vpop.f32.mrb[0].mxu0
        %v506 = vadd.f32 %v359, %v505
        %v507 = vpop.f32.mrb[0].mxu0
        %v508 = vadd.f32 %v363, %v507
        %509 = vdwg.mxu0
        %v510 = vtanh.pop %v435
        %v511 = vtanh.pop %v437
        %v512 = vtanh.pop %v506
        %v513 = vtanh.pop %v508
        %v514 = vlaneseq
        %v515 = vshrl.u32 %v514, 7
        %v516 = vsub.s32 0, %v515
        %v517 = vrot.slane %v346, %v516
        %518 = vmatprep.subr.mxu0 0.0
        %519 = vmatpush1.msra.mxu0 %v282
        %520 = vmatprep.subr.mxu0 0.0
        %521 = vmatpush1.msra.mxu0 %v283
        %522 = vmatprep.subr.mxu0 0.0
        %523 = vmatpush1.msra.mxu0 %v284
        %524 = vmatprep.subr.mxu0 0.0
        %525 = vmatpush1.msra.mxu0 %v285
        %526 = vmatprep.subr.mxu0 0.0
        %527 = vmatpush1.msra.mxu0 %v286
        %528 = vmatprep.subr.mxu0 0.0
        %529 = vmatpush1.msra.mxu0 %v287
        %530 = vmatprep.subr.mxu0 0.0
        %531 = vmatpush1.msra.mxu0 %v288
        %532 = vmatprep.subr.mxu0 0.0
        %533 = vmatpush1.msra.mxu0 %v289
        %534 = vmatprep.subr.mxu0 0.0
        %535 = vmatpush1.msra.mxu0 %v290
        %536 = vmatprep.subr.mxu0 0.0
        %537 = vmatpush1.msra.mxu0 %v291
        %538 = vmatprep.subr.mxu0 0.0
        %539 = vmatpush1.msra.mxu0 %v292
        %540 = vmatprep.subr.mxu0 0.0
        %541 = vmatpush1.msra.mxu0 %v293
        %542 = vmatprep.subr.mxu0 0.0
        %543 = vmatpush1.msra.mxu0 %v294
        %544 = vmatprep.subr.mxu0 0.0
        %545 = vmatpush1.msra.mxu0 %v295
        %546 = vmatprep.subr.mxu0 0.0
        %547 = vmatpush1.msra.mxu0 %v296
        %548 = vmatprep.subr.mxu0 0.0
        %549 = vmatpush1.msra.mxu0 %v297
        %550 = vmatprep.subr.mxu0 0.0
        %551 = vmatpush1.msra.mxu0 %v298
        %552 = vmatprep.subr.mxu0 0.0
        %553 = vmatpush1.msra.mxu0 %v299
        %554 = vmatprep.subr.mxu0 0.0
        %555 = vmatpush1.msra.mxu0 %v300
        %556 = vmatprep.subr.mxu0 0.0
        %557 = vmatpush1.msra.mxu0 %v301
        %558 = vmatprep.subr.mxu0 0.0
        %559 = vmatpush1.msra.mxu0 %v302
        %560 = vmatprep.subr.mxu0 0.0
        %561 = vmatpush1.msra.mxu0 %v303
        %562 = vmatprep.subr.mxu0 0.0
        %563 = vmatpush1.msra.mxu0 %v304
        %564 = vmatprep.subr.mxu0 0.0
        %565 = vmatpush1.msra.mxu0 %v305
        %566 = vmatprep.subr.mxu0 0.0
        %567 = vmatpush1.msra.mxu0 %v306
        %568 = vmatprep.subr.mxu0 0.0
        %569 = vmatpush1.msra.mxu0 %v307
        %570 = vmatprep.subr.mxu0 0.0
        %571 = vmatpush1.msra.mxu0 %v308
        %572 = vmatprep.subr.mxu0 0.0
        %573 = vmatpush1.msra.mxu0 %v309
        %574 = vmatprep.subr.mxu0 0.0
        %575 = vmatpush1.msra.mxu0 %v310
        %576 = vmatprep.subr.mxu0 0.0
        %577 = vmatpush1.msra.mxu0 %v311
        %578 = vmatprep.subr.mxu0 0.0
        %579 = vmatpush1.msra.mxu0 %v312
        %580 = vmatprep.subr.mxu0 0.0
        %581 = vmatpush1.msra.mxu0 %v313
        %582 = vmatprep.mubr.f32.mxu0 %v511
        %583 = vmatmul.mubr.f32.gmra.mrb[0].mxu0 %v510
        %v584 = vpop.f32.mrb[0].mxu0
        %v585 = vadd.f32 %v517, %v584
        %v586 = vpop.f32.mrb[0].mxu0
        %587 = vdwg.mxu0
        %588 = vmatprep.subr.mxu0 0.0
        %589 = vmatpush1.msra.mxu0 %v314
        %590 = vmatprep.subr.mxu0 0.0
        %591 = vmatpush1.msra.mxu0 %v315
        %592 = vmatprep.subr.mxu0 0.0
        %593 = vmatpush1.msra.mxu0 %v316
        %594 = vmatprep.subr.mxu0 0.0
        %595 = vmatpush1.msra.mxu0 %v317
        %596 = vmatprep.subr.mxu0 0.0
        %597 = vmatpush1.msra.mxu0 %v318
        %598 = vmatprep.subr.mxu0 0.0
        %599 = vmatpush1.msra.mxu0 %v319
        %600 = vmatprep.subr.mxu0 0.0
        %601 = vmatpush1.msra.mxu0 %v320
        %602 = vmatprep.subr.mxu0 0.0
        %603 = vmatpush1.msra.mxu0 %v321
        %604 = vmatprep.subr.mxu0 0.0
        %605 = vmatpush1.msra.mxu0 %v322
        %606 = vmatprep.subr.mxu0 0.0
        %607 = vmatpush1.msra.mxu0 %v323
        %608 = vmatprep.subr.mxu0 0.0
        %609 = vmatpush1.msra.mxu0 %v324
        %610 = vmatprep.subr.mxu0 0.0
        %611 = vmatpush1.msra.mxu0 %v325
        %612 = vmatprep.subr.mxu0 0.0
        %613 = vmatpush1.msra.mxu0 %v326
        %614 = vmatprep.subr.mxu0 0.0
        %615 = vmatpush1.msra.mxu0 %v327
        %616 = vmatprep.subr.mxu0 0.0
        %617 = vmatpush1.msra.mxu0 %v328
        %618 = vmatprep.subr.mxu0 0.0
        %619 = vmatpush1.msra.mxu0 %v329
        %620 = vmatprep.subr.mxu0 0.0
        %621 = vmatpush1.msra.mxu0 %v330
        %622 = vmatprep.subr.mxu0 0.0
        %623 = vmatpush1.msra.mxu0 %v331
        %624 = vmatprep.subr.mxu0 0.0
        %625 = vmatpush1.msra.mxu0 %v332
        %626 = vmatprep.subr.mxu0 0.0
        %627 = vmatpush1.msra.mxu0 %v333
        %628 = vmatprep.subr.mxu0 0.0
        %629 = vmatpush1.msra.mxu0 %v334
        %630 = vmatprep.subr.mxu0 0.0
        %631 = vmatpush1.msra.mxu0 %v335
        %632 = vmatprep.subr.mxu0 0.0
        %633 = vmatpush1.msra.mxu0 %v336
        %634 = vmatprep.subr.mxu0 0.0
        %635 = vmatpush1.msra.mxu0 %v337
        %636 = vmatprep.subr.mxu0 0.0
        %637 = vmatpush1.msra.mxu0 %v338
        %638 = vmatprep.subr.mxu0 0.0
        %639 = vmatpush1.msra.mxu0 %v339
        %640 = vmatprep.subr.mxu0 0.0
        %641 = vmatpush1.msra.mxu0 %v340
        %642 = vmatprep.subr.mxu0 0.0
        %643 = vmatpush1.msra.mxu0 %v341
        %644 = vmatprep.subr.mxu0 0.0
        %645 = vmatpush1.msra.mxu0 %v342
        %646 = vmatprep.subr.mxu0 0.0
        %647 = vmatpush1.msra.mxu0 %v343
        %648 = vmatprep.subr.mxu0 0.0
        %649 = vmatpush1.msra.mxu0 %v344
        %650 = vmatprep.subr.mxu0 0.0
        %651 = vmatpush1.msra.mxu0 %v345
        %652 = vmatprep.mubr.f32.mxu0 %v513
        %653 = vmatmul.mubr.f32.gmra.mrb[0].mxu0 %v512
        %v654 = vpop.f32.mrb[0].mxu0
        %v655 = vadd.f32 %v585, %v654
        %v656 = vpop.f32.mrb[0].mxu0
        %657 = vdwg.mxu0
        %v658 = vadd.f32 %v655, %v215
        %659 = vst [vmem:[%s214] sm:$0xff] %v658
        %s660 = sand.u32 %s97, 1
        %s661 = scalar_lea.sflag [#allocation4], %s660
        %s662 = sand.u32 %s97, 1
        %s663 = smul.addr %s662, 8
        %s664 = scalar_lea.vmem [#allocation8], %s663
        // Predicated region
        $region45: #{tpu_custom_call.1} parent=31 // pred_check
          %p665 = pneg %p107
        $region46: #{tpu_custom_call.1} parent=31 // pred_check_branch
          %667 = sbr.rel (%p665) target = $region48
        $region47: #{tpu_custom_call.1} parent=31 // pred_region
          %s669 = ssub.s32 128, 128
          %670 = vsyncadd %s661, %s669
          %s671 = smul.addr %s21, 128
          %s672 = scalar_lea.hbm %s3, %s671
          %s674 = sshll.u32 %s664, 4
          %s675 = int_to_ptr.vmem [resolvable:$true] %s674
          %677 = dma.vmem_to_hbm [thread:$0]  %s675, 128, %s672, %s661
        $region48: #{tpu_custom_call.1} parent=31 // pred_fallthru
          _
      $region32: #{tpu_custom_call.1} parent=5 // pred_fallthru
        _
      %p678 = scmp.le.s32.totalorder 2, %s16
      // Predicated region
      $region49: #{tpu_custom_call.1} parent=5 // pred_check
        %p679 = pneg %p678
      $region50: #{tpu_custom_call.1} parent=5 // pred_check_branch
        %681 = sbr.rel (%p679) target = $region52
      $region51: #{tpu_custom_call.1} parent=5 // pred_region
        %s682 = ssub.s32 %s16, 2
        // Predicated region
        $region53: #{tpu_custom_call.1} parent=51 // pred_check
          %p683 = pneg %p113
        $region54: #{tpu_custom_call.1} parent=51 // pred_check_branch
          %685 = sbr.rel (%p683) target = $region56
        $region55: #{tpu_custom_call.1} parent=51 // pred_region
          %s686 = sand.u32 %s98, 1
          %s687 = scalar_lea.sflag [#allocation4], %s686
          %s688 = sand.u32 %s98, 1
          %s689 = smul.addr %s688, 8
          %s690 = scalar_lea.vmem [#allocation8], %s689
          %691 = dma.done %s687, 128
        $region56: #{tpu_custom_call.1} parent=51 // pred_fallthru
          _
      $region52: #{tpu_custom_call.1} parent=5 // pred_fallthru
        _
    $region6: #{tpu_custom_call.1} parent=1 // loop_footer
      %s20 = sadd.s32 1, %s16
    $region7: #{tpu_custom_call.1} parent=1 // loop_footer_branch
      %15 = sbr.rel target = $region3
    $region8: #{tpu_custom_call.1} parent=1 // loop_exit
      _
    %692 = vsyncpa [#allocation3], 1
    %s693 = scalar_lea.sflag [#allocation3], 1
    %694 = vsyncpa %s693, 1
    %695 = vsyncpa [#allocation6], 1
    %696 = vsyncpa [#allocation4], 1
    %s697 = scalar_lea.sflag [#allocation4], 1
    %698 = vsyncpa %s697, 1

</llo_original>
